<compile_context>
chip_gen: v6e
topology: v6e:2x2x1
jax: 0.10.0
libtpu: 0.0.40
codegen_flags: <defaults>
</compile_context>

<pallas_src>
import math
import functools

import jax
import jax.numpy as jnp
from jax import lax
from jax.experimental import pallas as pl
from jax.experimental.pallas import tpu as pltpu


# ---------------- model hyperparameters (small, consistent with the module) ----
B = 2            # batch
T = 8            # num_tokens (== context_length)
D_IN = 32        # d_in
D_OUT = 64       # d_out
NUM_HEADS = 4
N_GROUPS = 2
HEAD_DIM = D_OUT // NUM_HEADS            # 16
N_REP = NUM_HEADS // N_GROUPS            # 2
D_KV = D_OUT // N_REP                    # n_groups * head_dim = 32
DROPOUT = 0.0                            # identity at inference
LANE = 128                               # TPU lane width


# ---------------- Pallas kernel ------------------------------------------------
def gqa_kernel(x_ref, wqkv_ref, wo_ref, bo_ref, o_ref, ctx_ref, *,
               seq, num_heads, n_groups, head_dim, d_out):
    """GQA forward for one batch element (one grid step).

    x_ref    : (T, d_in)        activations, bf16
    wqkv_ref : (d_in, 128)      fused [Wq | Wk_groups | Wv_groups], bf16
    wo_ref   : (d_out, d_pad)   out-projection weight, lane padded, bf16
    bo_ref   : (1, d_pad)       out-projection bias, lane padded, f32
    o_ref    : (T, d_pad)       output rows, lane padded
    ctx_ref  : (T, d_out)       bf16 VMEM scratch holding concat(ctx_h)
    """
    n_rep = num_heads // n_groups
    scale = 1.0 / math.sqrt(head_dim)

    # ---- single fused QKV projection: one MXU push for all heads/groups ----
    # (T, d_in) @ (d_in, 128) -> (T, 128), f32 accumulation, then one cast.
    qkv = jnp.dot(x_ref[...], wqkv_ref[...],
                  preferred_element_type=jnp.float32).astype(jnp.bfloat16)

    # Plain per-batch causal additive bias (finite large-negative, so exp()
    # underflows to exactly 0 -- no -inf/NaN hazard; every row keeps its diag).
    row = lax.broadcasted_iota(jnp.int32, (seq, seq), 0)
    col = lax.broadcasted_iota(jnp.int32, (seq, seq), 1)
    bias = jnp.where(row >= col, jnp.float32(0.0), jnp.float32(-1e30))   # (T, T)

    k_base = d_out                        # K group columns start here
    v_base = d_out + n_groups * head_dim  # V group columns start here

    for g in range(n_groups):             # static loop: K/V computed ONCE per group
        k_g = qkv[:, k_base + g * head_dim: k_base + (g + 1) * head_dim]  # (T, hd)
        v_g = qkv[:, v_base + g * head_dim: v_base + (g + 1) * head_dim]  # (T, hd)

        for r in range(n_rep):             # heads sharing this KV group
            h = g * n_rep + r
            q_h = qkv[:, h * head_dim:(h + 1) * head_dim]                 # (T, hd)

            # scores = q @ k^T: contract last axes, no transpose materialized
            s = lax.dot_general(q_h, k_g,
                                dimension_numbers=(((1,), (1,)), ((), ())),
                                preferred_element_type=jnp.float32)       # (T, T)
            s = s * scale + bias

            # numerically-stable softmax (f32); divide -> EUP approx reciprocal
            m = jnp.max(s, axis=-1, keepdims=True)
            p = jnp.exp(s - m)
            p = p * pl.reciprocal(jnp.sum(p, axis=-1, keepdims=True), approx=True)
            # dropout on p is identity at inference

            ctx = jnp.dot(p.astype(jnp.bfloat16), v_g,
                          preferred_element_type=jnp.float32)             # (T, hd)
            # write head slice into the concat scratch at its lane offset
            ctx_ref[:, h * head_dim:(h + 1) * head_dim] = ctx.astype(jnp.bfloat16)

    # ---- fused "concat heads + out projection": ONE matmul + one bias add ----
    out = jnp.dot(ctx_ref[...], wo_ref[...],
                  preferred_element_type=jnp.float32) + bo_ref[...]       # (T, d_pad)
    o_ref[...] = out.astype(o_ref.dtype)                                  # lane-dense store


# ---------------- one-time parameter packing (do NOT repeat per call) ----------
def pack_params(wq, wk, wv, wo, bo, *, lane=LANE):
    """Pack/cast weights once at init time: fused bf16 QKV, lane-padded Wo/bo."""
    d_in = wq.shape[0]
    d_out = wo.shape[0]
    d_pad = max(lane, ((d_out + lane - 1) // lane) * lane)

    # fused QKV weight: [Wq (d_out) | Wk (d_kv) | Wv (d_kv)] along lanes
    wqkv = jnp.concatenate([wq, wk, wv], axis=1)
    qkv_w = wqkv.shape[1]
    qkv_pad = max(lane, ((qkv_w + lane - 1) // lane) * lane)
    if qkv_pad != qkv_w:  # keep lane-dense (at these shapes it is exactly 128)
        wqkv = jnp.zeros((d_in, qkv_pad), wqkv.dtype).at[:, :qkv_w].set(wqkv)
    wqkv = wqkv.astype(jnp.bfloat16)

    wo_p = jnp.zeros((d_out, d_pad), jnp.bfloat16).at[:, :d_out].set(
        wo.astype(jnp.bfloat16))
    bo_p = jnp.zeros((1, d_pad), jnp.float32).at[:, :d_out].set(
        bo.astype(jnp.float32))
    return wqkv, wo_p, bo_p


# ---------------- jitted wrapper ------------------------------------------------
@functools.partial(jax.jit, static_argnames=("num_heads", "n_groups"))
def grouped_query_attention(x, wqkv, wo_p, bo_p, *, num_heads, n_groups):
    b, t, d_in = x.shape
    d_out, d_pad = wo_p.shape
    head_dim = d_out // num_heads

    x_bf = x.astype(jnp.bfloat16)   # single pre-cast; no per-head casts in kernel

    kernel = functools.partial(gqa_kernel, seq=t, num_heads=num_heads,
                               n_groups=n_groups, head_dim=head_dim, d_out=d_out)

    out = pl.pallas_call(
        kernel,
        out_shape=jax.ShapeDtypeStruct((b, t, d_pad), x.dtype),
        grid_spec=pltpu.PrefetchScalarGridSpec(
            num_scalar_prefetch=0,
            grid=(b,),   # one batch element per grid step -> both v7x TCs used
            in_specs=[
                pl.BlockSpec((None, t, d_in), lambda i: (i, 0, 0)),
                pl.BlockSpec(wqkv.shape, lambda i: (0, 0)),
                pl.BlockSpec(wo_p.shape, lambda i: (0, 0)),
                pl.BlockSpec(bo_p.shape, lambda i: (0, 0)),
            ],
            out_specs=pl.BlockSpec((None, t, d_pad), lambda i: (i, 0, 0)),
            scratch_shapes=[pltpu.VMEM((t, d_out), jnp.bfloat16)],
        ),
        compiler_params=pltpu.CompilerParams(
            dimension_semantics=("parallel",)),
    )(x_bf, wqkv, wo_p, bo_p)

    return out[..., :d_out]   # slice off lane padding


# ---------------- pure-JAX reference (mirrors the PyTorch forward) -------------
def gqa_reference(x, wq, wk, wv, wo, bo):
    b, t, _ = x.shape
    q = x @ wq                                    # (B, T, d_out)
    k = x @ wk                                    # (B, T, d_kv)
    v = x @ wv
    q = q.reshape(b, t, NUM_HEADS, HEAD_DIM)
    k = k.reshape(b, t, N_GROUPS, HEAD_DIM)
    v = v.reshape(b, t, N_GROUPS, HEAD_DIM)
    k = jnp.repeat(k, N_REP, axis=2)              # repeat_interleave along head axis
    v = jnp.repeat(v, N_REP, axis=2)
    q = q.transpose(0, 2, 1, 3)                   # (B, H, T, hd)
    k = k.transpose(0, 2, 1, 3)
    v = v.transpose(0, 2, 1, 3)
    scores = jnp.einsum('bhqd,bhkd->bhqk', q, k)
    mask = jnp.triu(jnp.ones((t, t), bool), k=1)
    scores = jnp.where(mask[None, None], -jnp.inf, scores)
    w = jax.nn.softmax(scores / math.sqrt(HEAD_DIM), axis=-1)
    ctx = jnp.einsum('bhqk,bhkd->bhqd', w, v)
    ctx = ctx.transpose(0, 2, 1, 3).reshape(b, t, D_OUT)
    return ctx @ wo + bo


# ---------------- main ----------------------------------------------------------
if __name__ == "__main__":
    key = jax.random.PRNGKey(0)
    kx, kq, kk, kv, ko, kb = jax.random.split(key, 6)

    x = jax.random.normal(kx, (B, T, D_IN), dtype=jnp.float32)

    # deterministic parameter init (Linear weights stored as (in, out); qkv_bias=False)
    wq = jax.random.normal(kq, (D_IN, D_OUT), dtype=jnp.float32) * (1.0 / math.sqrt(D_IN))
    wk = jax.random.normal(kk, (D_IN, D_KV), dtype=jnp.float32) * (1.0 / math.sqrt(D_IN))
    wv = jax.random.normal(kv, (D_IN, D_KV), dtype=jnp.float32) * (1.0 / math.sqrt(D_IN))
    wo = jax.random.normal(ko, (D_OUT, D_OUT), dtype=jnp.float32) * (1.0 / math.sqrt(D_OUT))
    bo = jax.random.normal(kb, (1, D_OUT), dtype=jnp.float32) * 0.01

    # one-time weight packing (hoisted out of the per-call path)
    wqkv, wo_p, bo_p = pack_params(wq, wk, wv, wo, bo)

    out = grouped_query_attention(x, wqkv, wo_p, bo_p,
                                  num_heads=NUM_HEADS, n_groups=N_GROUPS)
    out = jax.block_until_ready(out)

    ref = gqa_reference(x, wq, wk, wv, wo, bo)
    assert out.shape == (B, T, D_OUT)
    # Kernel feeds the MXU bf16 operands with f32 accumulation and uses the EUP
    # approximate reciprocal in softmax, so tolerance vs. the all-f32 reference
    # is loosened accordingly.
    err = float(jnp.max(jnp.abs(out - ref)))
    assert jnp.allclose(out, ref, atol=5e-2, rtol=5e-2), \
        f"mismatch vs reference, max abs err={err}"

    print("KERNEL_OK")
</pallas_src>

<mosaic_0001>
module attributes {stable_mosaic.version = 11 : i64} {
  func.func @gqa_kernel(%arg0: i32, %arg1: memref<1x8x32xbf16, #tpu.memory_space<vmem>>, %arg2: memref<32x128xbf16, #tpu.memory_space<vmem>>, %arg3: memref<64x128xbf16, #tpu.memory_space<vmem>>, %arg4: memref<1x128xf32, #tpu.memory_space<vmem>>, %arg5: memref<1x8x128xf32, #tpu.memory_space<vmem>>, %arg6: memref<8x64xbf16, #tpu.memory_space<vmem>>) attributes {dimension_semantics = [#tpu.dimension_semantics<parallel>], iteration_bounds = array<i64: 2>, scalar_prefetch = 0 : i64, scratch_operands = 1 : i64, tpu.core_type = #tpu.core_type<tc>, window_params = [{transform_indices = @transform_0, window_bounds = array<i64: 1, 8, 32>}, {pipeline_mode = #tpu.pipeline_mode<synchronous>, transform_indices = @transform_1, window_bounds = array<i64: 32, 128>}, {pipeline_mode = #tpu.pipeline_mode<synchronous>, transform_indices = @transform_2, window_bounds = array<i64: 64, 128>}, {pipeline_mode = #tpu.pipeline_mode<synchronous>, transform_indices = @transform_3, window_bounds = array<i64: 1, 128>}, {transform_indices = @transform_4, window_bounds = array<i64: 1, 8, 128>}]} {
    %c0 = arith.constant 0 : index
    %c0_0 = arith.constant 0 : index
    %c0_1 = arith.constant 0 : index
    %0 = vector.load %arg1[%c0, %c0_0, %c0_1] : memref<1x8x32xbf16, #tpu.memory_space<vmem>>, vector<1x8x32xbf16>
    %1 = vector.shape_cast %0 : vector<1x8x32xbf16> to vector<8x32xbf16>
    %c0_2 = arith.constant 0 : index
    %c0_3 = arith.constant 0 : index
    %2 = vector.load %arg2[%c0_2, %c0_3] : memref<32x128xbf16, #tpu.memory_space<vmem>>, vector<32x128xbf16>
    %cst = arith.constant dense<0.000000e+00> : vector<8x128xf32>
    %3 = tpu.matmul %1, %2, %cst {dimension_numbers = #tpu.dot_dimension_numbers<[1], [0], [0], [1], [0, 0, 1, 1], [], []>} : vector<8x32xbf16>, vector<32x128xbf16>, vector<8x128xf32> -> vector<8x128xf32>
    %4 = arith.truncf %3 : vector<8x128xf32> to vector<8x128xbf16>
    %5 = tpu.iota {dimensions = array<i32: 0>} : vector<8x8xi32>
    %6 = tpu.iota {dimensions = array<i32: 1>} : vector<8x8xi32>
    %7 = arith.cmpi sge, %5, %6 : vector<8x8xi32>
    %cst_4 = arith.constant 0.000000e+00 : f32
    %cst_5 = arith.constant -1.000000e+30 : f32
    %8 = vector.broadcast %cst_4 : f32 to vector<8x8xf32>
    %9 = vector.broadcast %cst_5 : f32 to vector<8x8xf32>
    %10 = arith.select %7, %8, %9 : vector<8x8xi1>, vector<8x8xf32>
    %11 = vector.extract_strided_slice %4 {offsets = [0, 64], sizes = [8, 16], strides = [1, 1]} : vector<8x128xbf16> to vector<8x16xbf16>
    %12 = vector.extract_strided_slice %4 {offsets = [0, 96], sizes = [8, 16], strides = [1, 1]} : vector<8x128xbf16> to vector<8x16xbf16>
    %13 = vector.extract_strided_slice %4 {offsets = [0, 0], sizes = [8, 16], strides = [1, 1]} : vector<8x128xbf16> to vector<8x16xbf16>
    %cst_6 = arith.constant dense<0.000000e+00> : vector<8x8xf32>
    %14 = tpu.matmul %13, %11, %cst_6 {dimension_numbers = #tpu.dot_dimension_numbers<[1], [1], [0], [0], [0, 0, 1, 0], [], []>} : vector<8x16xbf16>, vector<8x16xbf16>, vector<8x8xf32> -> vector<8x8xf32>
    %cst_7 = arith.constant 2.500000e-01 : f32
    %15 = vector.broadcast %cst_7 : f32 to vector<8x8xf32>
    %16 = arith.mulf %14, %15 : vector<8x8xf32>
    %17 = arith.addf %16, %10 : vector<8x8xf32>
    %cst_8 = arith.constant dense<0xFF800000> : vector<8xf32>
    %18 = vector.multi_reduction <maximumf>, %17, %cst_8 [1] : vector<8x8xf32> to vector<8xf32>
    %19 = vector.shape_cast %18 : vector<8xf32> to vector<8x1xf32>
    %20 = vector.broadcast %19 : vector<8x1xf32> to vector<8x8xf32>
    %21 = arith.subf %17, %20 : vector<8x8xf32>
    %22 = math.exp %21 : vector<8x8xf32>
    %cst_9 = arith.constant dense<0.000000e+00> : vector<8xf32>
    %23 = vector.multi_reduction <add>, %22, %cst_9 [1] : vector<8x8xf32> to vector<8xf32>
    %24 = vector.shape_cast %23 : vector<8xf32> to vector<8x1xf32>
    %25 = tpu.reciprocal %24 {approx = true} : vector<8x1xf32> -> vector<8x1xf32>
    %26 = vector.broadcast %25 : vector<8x1xf32> to vector<8x8xf32>
    %27 = arith.mulf %22, %26 : vector<8x8xf32>
    %28 = arith.truncf %27 : vector<8x8xf32> to vector<8x8xbf16>
    %cst_10 = arith.constant dense<0.000000e+00> : vector<8x16xf32>
    %29 = tpu.matmul %28, %12, %cst_10 {dimension_numbers = #tpu.dot_dimension_numbers<[1], [0], [0], [1], [0, 0, 1, 1], [], []>} : vector<8x8xbf16>, vector<8x16xbf16>, vector<8x16xf32> -> vector<8x16xf32>
    %30 = arith.truncf %29 : vector<8x16xf32> to vector<8x16xbf16>
    %c0_11 = arith.constant 0 : index
    %c0_12 = arith.constant 0 : index
    %31 = vector.load %arg6[%c0_11, %c0_12] : memref<8x64xbf16, #tpu.memory_space<vmem>>, vector<8x16xbf16>
    tpu.vector_store %arg6[%c0_11, %c0_12], %30 {strides = array<i32>} : memref<8x64xbf16, #tpu.memory_space<vmem>>, vector<8x16xbf16>,
    %32 = vector.extract_strided_slice %4 {offsets = [0, 16], sizes = [8, 16], strides = [1, 1]} : vector<8x128xbf16> to vector<8x16xbf16>
    %cst_13 = arith.constant dense<0.000000e+00> : vector<8x8xf32>
    %33 = tpu.matmul %32, %11, %cst_13 {dimension_numbers = #tpu.dot_dimension_numbers<[1], [1], [0], [0], [0, 0, 1, 0], [], []>} : vector<8x16xbf16>, vector<8x16xbf16>, vector<8x8xf32> -> vector<8x8xf32>
    %cst_14 = arith.constant 2.500000e-01 : f32
    %34 = vector.broadcast %cst_14 : f32 to vector<8x8xf32>
    %35 = arith.mulf %33, %34 : vector<8x8xf32>
    %36 = arith.addf %35, %10 : vector<8x8xf32>
    %cst_15 = arith.constant dense<0xFF800000> : vector<8xf32>
    %37 = vector.multi_reduction <maximumf>, %36, %cst_15 [1] : vector<8x8xf32> to vector<8xf32>
    %38 = vector.shape_cast %37 : vector<8xf32> to vector<8x1xf32>
    %39 = vector.broadcast %38 : vector<8x1xf32> to vector<8x8xf32>
    %40 = arith.subf %36, %39 : vector<8x8xf32>
    %41 = math.exp %40 : vector<8x8xf32>
    %cst_16 = arith.constant dense<0.000000e+00> : vector<8xf32>
    %42 = vector.multi_reduction <add>, %41, %cst_16 [1] : vector<8x8xf32> to vector<8xf32>
    %43 = vector.shape_cast %42 : vector<8xf32> to vector<8x1xf32>
    %44 = tpu.reciprocal %43 {approx = true} : vector<8x1xf32> -> vector<8x1xf32>
    %45 = vector.broadcast %44 : vector<8x1xf32> to vector<8x8xf32>
    %46 = arith.mulf %41, %45 : vector<8x8xf32>
    %47 = arith.truncf %46 : vector<8x8xf32> to vector<8x8xbf16>
    %cst_17 = arith.constant dense<0.000000e+00> : vector<8x16xf32>
    %48 = tpu.matmul %47, %12, %cst_17 {dimension_numbers = #tpu.dot_dimension_numbers<[1], [0], [0], [1], [0, 0, 1, 1], [], []>} : vector<8x8xbf16>, vector<8x16xbf16>, vector<8x16xf32> -> vector<8x16xf32>
    %49 = arith.truncf %48 : vector<8x16xf32> to vector<8x16xbf16>
    %c0_18 = arith.constant 0 : index
    %c16 = arith.constant 16 : index
    %50 = vector.load %arg6[%c0_18, %c16] : memref<8x64xbf16, #tpu.memory_space<vmem>>, vector<8x16xbf16>
    tpu.vector_store %arg6[%c0_18, %c16], %49 {strides = array<i32>} : memref<8x64xbf16, #tpu.memory_space<vmem>>, vector<8x16xbf16>,
    %51 = vector.extract_strided_slice %4 {offsets = [0, 80], sizes = [8, 16], strides = [1, 1]} : vector<8x128xbf16> to vector<8x16xbf16>
    %52 = vector.extract_strided_slice %4 {offsets = [0, 112], sizes = [8, 16], strides = [1, 1]} : vector<8x128xbf16> to vector<8x16xbf16>
    %53 = vector.extract_strided_slice %4 {offsets = [0, 32], sizes = [8, 16], strides = [1, 1]} : vector<8x128xbf16> to vector<8x16xbf16>
    %cst_19 = arith.constant dense<0.000000e+00> : vector<8x8xf32>
    %54 = tpu.matmul %53, %51, %cst_19 {dimension_numbers = #tpu.dot_dimension_numbers<[1], [1], [0], [0], [0, 0, 1, 0], [], []>} : vector<8x16xbf16>, vector<8x16xbf16>, vector<8x8xf32> -> vector<8x8xf32>
    %cst_20 = arith.constant 2.500000e-01 : f32
    %55 = vector.broadcast %cst_20 : f32 to vector<8x8xf32>
    %56 = arith.mulf %54, %55 : vector<8x8xf32>
    %57 = arith.addf %56, %10 : vector<8x8xf32>
    %cst_21 = arith.constant dense<0xFF800000> : vector<8xf32>
    %58 = vector.multi_reduction <maximumf>, %57, %cst_21 [1] : vector<8x8xf32> to vector<8xf32>
    %59 = vector.shape_cast %58 : vector<8xf32> to vector<8x1xf32>
    %60 = vector.broadcast %59 : vector<8x1xf32> to vector<8x8xf32>
    %61 = arith.subf %57, %60 : vector<8x8xf32>
    %62 = math.exp %61 : vector<8x8xf32>
    %cst_22 = arith.constant dense<0.000000e+00> : vector<8xf32>
    %63 = vector.multi_reduction <add>, %62, %cst_22 [1] : vector<8x8xf32> to vector<8xf32>
    %64 = vector.shape_cast %63 : vector<8xf32> to vector<8x1xf32>
    %65 = tpu.reciprocal %64 {approx = true} : vector<8x1xf32> -> vector<8x1xf32>
    %66 = vector.broadcast %65 : vector<8x1xf32> to vector<8x8xf32>
    %67 = arith.mulf %62, %66 : vector<8x8xf32>
    %68 = arith.truncf %67 : vector<8x8xf32> to vector<8x8xbf16>
    %cst_23 = arith.constant dense<0.000000e+00> : vector<8x16xf32>
    %69 = tpu.matmul %68, %52, %cst_23 {dimension_numbers = #tpu.dot_dimension_numbers<[1], [0], [0], [1], [0, 0, 1, 1], [], []>} : vector<8x8xbf16>, vector<8x16xbf16>, vector<8x16xf32> -> vector<8x16xf32>
    %70 = arith.truncf %69 : vector<8x16xf32> to vector<8x16xbf16>
    %c0_24 = arith.constant 0 : index
    %c32 = arith.constant 32 : index
    %71 = vector.load %arg6[%c0_24, %c32] : memref<8x64xbf16, #tpu.memory_space<vmem>>, vector<8x16xbf16>
    tpu.vector_store %arg6[%c0_24, %c32], %70 {strides = array<i32>} : memref<8x64xbf16, #tpu.memory_space<vmem>>, vector<8x16xbf16>,
    %72 = vector.extract_strided_slice %4 {offsets = [0, 48], sizes = [8, 16], strides = [1, 1]} : vector<8x128xbf16> to vector<8x16xbf16>
    %cst_25 = arith.constant dense<0.000000e+00> : vector<8x8xf32>
    %73 = tpu.matmul %72, %51, %cst_25 {dimension_numbers = #tpu.dot_dimension_numbers<[1], [1], [0], [0], [0, 0, 1, 0], [], []>} : vector<8x16xbf16>, vector<8x16xbf16>, vector<8x8xf32> -> vector<8x8xf32>
    %cst_26 = arith.constant 2.500000e-01 : f32
    %74 = vector.broadcast %cst_26 : f32 to vector<8x8xf32>
    %75 = arith.mulf %73, %74 : vector<8x8xf32>
    %76 = arith.addf %75, %10 : vector<8x8xf32>
    %cst_27 = arith.constant dense<0xFF800000> : vector<8xf32>
    %77 = vector.multi_reduction <maximumf>, %76, %cst_27 [1] : vector<8x8xf32> to vector<8xf32>
    %78 = vector.shape_cast %77 : vector<8xf32> to vector<8x1xf32>
    %79 = vector.broadcast %78 : vector<8x1xf32> to vector<8x8xf32>
    %80 = arith.subf %76, %79 : vector<8x8xf32>
    %81 = math.exp %80 : vector<8x8xf32>
    %cst_28 = arith.constant dense<0.000000e+00> : vector<8xf32>
    %82 = vector.multi_reduction <add>, %81, %cst_28 [1] : vector<8x8xf32> to vector<8xf32>
    %83 = vector.shape_cast %82 : vector<8xf32> to vector<8x1xf32>
    %84 = tpu.reciprocal %83 {approx = true} : vector<8x1xf32> -> vector<8x1xf32>
    %85 = vector.broadcast %84 : vector<8x1xf32> to vector<8x8xf32>
    %86 = arith.mulf %81, %85 : vector<8x8xf32>
    %87 = arith.truncf %86 : vector<8x8xf32> to vector<8x8xbf16>
    %cst_29 = arith.constant dense<0.000000e+00> : vector<8x16xf32>
    %88 = tpu.matmul %87, %52, %cst_29 {dimension_numbers = #tpu.dot_dimension_numbers<[1], [0], [0], [1], [0, 0, 1, 1], [], []>} : vector<8x8xbf16>, vector<8x16xbf16>, vector<8x16xf32> -> vector<8x16xf32>
    %89 = arith.truncf %88 : vector<8x16xf32> to vector<8x16xbf16>
    %c0_30 = arith.constant 0 : index
    %c48 = arith.constant 48 : index
    %90 = vector.load %arg6[%c0_30, %c48] : memref<8x64xbf16, #tpu.memory_space<vmem>>, vector<8x16xbf16>
    tpu.vector_store %arg6[%c0_30, %c48], %89 {strides = array<i32>} : memref<8x64xbf16, #tpu.memory_space<vmem>>, vector<8x16xbf16>,
    %c0_31 = arith.constant 0 : index
    %c0_32 = arith.constant 0 : index
    %91 = vector.load %arg6[%c0_31, %c0_32] : memref<8x64xbf16, #tpu.memory_space<vmem>>, vector<8x64xbf16>
    %c0_33 = arith.constant 0 : index
    %c0_34 = arith.constant 0 : index
    %92 = vector.load %arg3[%c0_33, %c0_34] : memref<64x128xbf16, #tpu.memory_space<vmem>>, vector<64x128xbf16>
    %cst_35 = arith.constant dense<0.000000e+00> : vector<8x128xf32>
    %93 = tpu.matmul %91, %92, %cst_35 {dimension_numbers = #tpu.dot_dimension_numbers<[1], [0], [0], [1], [0, 0, 1, 1], [], []>} : vector<8x64xbf16>, vector<64x128xbf16>, vector<8x128xf32> -> vector<8x128xf32>
    %c0_36 = arith.constant 0 : index
    %c0_37 = arith.constant 0 : index
    %94 = vector.load %arg4[%c0_36, %c0_37] : memref<1x128xf32, #tpu.memory_space<vmem>>, vector<1x128xf32>
    %95 = vector.broadcast %94 : vector<1x128xf32> to vector<8x128xf32>
    %96 = arith.addf %93, %95 : vector<8x128xf32>
    %c0_38 = arith.constant 0 : index
    %c0_39 = arith.constant 0 : index
    %c0_40 = arith.constant 0 : index
    %97 = vector.load %arg5[%c0_38, %c0_39, %c0_40] : memref<1x8x128xf32, #tpu.memory_space<vmem>>, vector<1x8x128xf32>
    %98 = vector.shape_cast %97 : vector<1x8x128xf32> to vector<8x128xf32>
    %99 = vector.shape_cast %96 : vector<8x128xf32> to vector<1x8x128xf32>
    tpu.vector_store %arg5[%c0_38, %c0_39, %c0_40], %99 {strides = array<i32>} : memref<1x8x128xf32, #tpu.memory_space<vmem>>, vector<1x8x128xf32>,
    return
  }
  func.func @transform_0(%arg0: i32) -> (i32, i32, i32) {
    %c0_i32 = arith.constant 0 : i32
    %c0_i32_0 = arith.constant 0 : i32
    %c0_i32_1 = arith.constant 0 : i32
    return %arg0, %c0_i32, %c0_i32_0 : i32, i32, i32
  }
  func.func @transform_1(%arg0: i32) -> (i32, i32) {
    %c0_i32 = arith.constant 0 : i32
    %c0_i32_0 = arith.constant 0 : i32
    %c0_i32_1 = arith.constant 0 : i32
    return %c0_i32, %c0_i32_0 : i32, i32
  }
  func.func @transform_2(%arg0: i32) -> (i32, i32) {
    %c0_i32 = arith.constant 0 : i32
    %c0_i32_0 = arith.constant 0 : i32
    %c0_i32_1 = arith.constant 0 : i32
    return %c0_i32, %c0_i32_0 : i32, i32
  }
  func.func @transform_3(%arg0: i32) -> (i32, i32) {
    %c0_i32 = arith.constant 0 : i32
    %c0_i32_0 = arith.constant 0 : i32
    %c0_i32_1 = arith.constant 0 : i32
    return %c0_i32, %c0_i32_0 : i32, i32
  }
  func.func @transform_4(%arg0: i32) -> (i32, i32, i32) {
    %c0_i32 = arith.constant 0 : i32
    %c0_i32_0 = arith.constant 0 : i32
    %c0_i32_1 = arith.constant 0 : i32
    return %arg0, %c0_i32, %c0_i32_0 : i32, i32, i32
  }
}

</mosaic_0001>

<llo_original>
// kernel: grouped_query_attention.1
$region0: #{grouped_query_attention.1}
  #allocation0 [shape = 'u32[]', space=smem, size = 0x4, offset = 0x4, fixed_abs, tag = 'smem constant byte address 0x4 - core index']
  #allocation1 [shape = 'u32[144,128]{1,0:T(1,128)}', space=vmem, size = 0x12000, scoped, tag = 'internal scratch']
  #allocation2 [shape = 'bf16[8,64]{1,0:T(8,128)(2,1)}', space=vmem, size = 0x800, scoped, tag = 'scratch operand']
  %s0 = inlined_call_operand.vmem [shape: bf16[2,8,32], index: 0, kind: input, shape index: {}]
  %s1 = inlined_call_operand.vmem [shape: bf16[32,128], index: 1, kind: input, shape index: {}]
  %s2 = inlined_call_operand.hbm [shape: bf16[64,128], index: 2, kind: input, shape index: {}]
  %s3 = inlined_call_operand.vmem [shape: f32[1,128], index: 3, kind: input, shape index: {}]
  %s4 = inlined_call_operand.hbm [shape: f32[2,8,128], index: 4, kind: output, shape index: {}]
  %s5 = sld [smem:[#allocation0]]
  $region53: #{grouped_query_attention.1} parent=0
    _
  %s7 = ssub.s32 1, %s5
  %s8 = scalar_select 0, %s7, %s5
  $region1: #{grouped_query_attention.1} parent=0
    #allocation3 [shape = 'u8[16384]{0}', space=vmem, size = 0x4000, scoped, tag = 'input window, operand 2, single buffered']
    #allocation4 [shape = 's32[2]{0}', space=sflag, size = 0x8, scoped, tag = 'scoped memory for grouped_query_attention.1']
    #allocation5 [shape = 's32[2]{0}', space=sflag, size = 0x8, scoped, tag = 'scoped memory for grouped_query_attention.1']
    #allocation6 [shape = 'u8[8192]{0}', space=vmem, size = 0x2000, scoped, tag = 'output window, operand 0']
    %9 = vsyncpa [#allocation4], 0
    %10 = vsyncpa [#allocation5], 0
    %s11 = scalar_lea.sflag [#allocation5], 1
    %12 = vsyncpa %s11, 0
    loop: start=0, step=1, limit=4
    $region2: #{grouped_query_attention.1} parent=1 // loop_pre_header
      _
    $region3: #{grouped_query_attention.1} parent=1 // loop_header
      %s14 = sphi 0, %s18
      %p15 = scmp.ge.s32.totalorder %s14, 4
      %s24 = sphi 0, %s26
      %s27 = sphi 0, %s24
      %s28 = sphi 0, %s27
      %s44 = sphi 0, %s28
      %s48 = sphi 0, %s48
      %s50 = sphi 0, %s48
      %s51 = sphi 0, %s50
      %s65 = sphi 0, %s51
      %s69 = sphi 0, %s69
      %s71 = sphi 0, %s69
      %s72 = sphi 0, %s71
      %s86 = sphi 0, %s72
      %s90 = sphi 0, %s90
      %s92 = sphi 0, %s90
      %s93 = sphi 0, %s92
      %s107 = sphi 0, %s93
      %s113 = sphi 0, %s115
      %s116 = sphi 0, %s113
      %s117 = sphi 0, %s116
      %s133 = sphi 0, %s117
    $region4: #{grouped_query_attention.1} parent=1 // loop_header_branch
      %17 = sbr.rel (%p15) target = $region8
    $region5: #{grouped_query_attention.1} parent=1 // loop_body
      %s19 = ssub.s32 %s14, 1
      %s20 = ssub.s32 %s14, 2
      %s21 = sadd.s32 %s14, 1
      %s22 = ssub.s32 %s14, %s21
      %p23 = scmp.eq.s32.totalorder %s22, 0
      %s25 = sadd.s32 %s24, 1
      %s26 = scalar_select %p23, %s24, %s25
      %p29 = pneg %p23
      %p30 = scmp.eq.s32.totalorder %s14, 1
      %p31 = por %p29, %p30
      %p32 = scmp.ne.s32.totalorder %s24, %s27
      %p33 = scmp.eq.s32.totalorder %s14, 0
      %p34 = por %p32, %p33
      %p35 = scmp.ne.s32.totalorder %s24, %s27
      %p36 = scmp.eq.s32.totalorder %s19, 1
      %p37 = por %p35, %p36
      %p38 = scmp.ne.s32.totalorder %s27, %s28
      %p39 = scmp.eq.s32.totalorder %s19, 0
      %p40 = por %p38, %p39
      %p41 = scmp.ne.s32.totalorder %s27, %s28
      %p42 = scmp.eq.s32.totalorder %s20, 1
      %p43 = por %p41, %p42
      %p45 = scmp.ne.s32.totalorder %s28, %s44
      %p46 = scmp.eq.s32.totalorder %s20, 0
      %p47 = por %p45, %p46
      %s49 = sadd.s32 %s48, 1
      %p52 = scmp.eq.s32.totalorder %s14, 1
      %p53 = scmp.ne.s32.totalorder %s48, %s50
      %p54 = scmp.eq.s32.totalorder %s14, 0
      %p55 = por %p53, %p54
      %p56 = scmp.ne.s32.totalorder %s48, %s50
      %p57 = scmp.eq.s32.totalorder %s19, 1
      %p58 = por %p56, %p57
      %p59 = scmp.ne.s32.totalorder %s50, %s51
      %p60 = scmp.eq.s32.totalorder %s19, 0
      %p61 = por %p59, %p60
      %p62 = scmp.ne.s32.totalorder %s50, %s51
      %p63 = scmp.eq.s32.totalorder %s20, 1
      %p64 = por %p62, %p63
      %p66 = scmp.ne.s32.totalorder %s51, %s65
      %p67 = scmp.eq.s32.totalorder %s20, 0
      %p68 = por %p66, %p67
      %s70 = sadd.s32 %s69, 1
      %p73 = scmp.eq.s32.totalorder %s14, 1
      %p74 = scmp.ne.s32.totalorder %s69, %s71
      %p75 = scmp.eq.s32.totalorder %s14, 0
      %p76 = por %p74, %p75
      %p77 = scmp.ne.s32.totalorder %s69, %s71
      %p78 = scmp.eq.s32.totalorder %s19, 1
      %p79 = por %p77, %p78
      %p80 = scmp.ne.s32.totalorder %s71, %s72
      %p81 = scmp.eq.s32.totalorder %s19, 0
      %p82 = por %p80, %p81
      %p83 = scmp.ne.s32.totalorder %s71, %s72
      %p84 = scmp.eq.s32.totalorder %s20, 1
      %p85 = por %p83, %p84
      %p87 = scmp.ne.s32.totalorder %s72, %s86
      %p88 = scmp.eq.s32.totalorder %s20, 0
      %p89 = por %p87, %p88
      %s91 = sadd.s32 %s90, 1
      %p94 = scmp.eq.s32.totalorder %s14, 1
      %p95 = scmp.ne.s32.totalorder %s90, %s92
      %p96 = scmp.eq.s32.totalorder %s14, 0
      %p97 = por %p95, %p96
      %p98 = scmp.ne.s32.totalorder %s90, %s92
      %p99 = scmp.eq.s32.totalorder %s19, 1
      %p100 = por %p98, %p99
      %p101 = scmp.ne.s32.totalorder %s92, %s93
      %p102 = scmp.eq.s32.totalorder %s19, 0
      %p103 = por %p101, %p102
      %p104 = scmp.ne.s32.totalorder %s92, %s93
      %p105 = scmp.eq.s32.totalorder %s20, 1
      %p106 = por %p104, %p105
      %p108 = scmp.ne.s32.totalorder %s93, %s107
      %p109 = scmp.eq.s32.totalorder %s20, 0
      %p110 = por %p108, %p109
      %s111 = ssub.s32 %s14, %s21
      %p112 = scmp.eq.s32.totalorder %s111, 0
      %s114 = sadd.s32 %s113, 1
      %s115 = scalar_select %p112, %s113, %s114
      %p118 = pneg %p112
      %p119 = scmp.eq.s32.totalorder %s14, 1
      %p120 = por %p118, %p119
      %p121 = scmp.ne.s32.totalorder %s113, %s116
      %p122 = scmp.eq.s32.totalorder %s14, 0
      %p123 = por %p121, %p122
      %p124 = scmp.ne.s32.totalorder %s113, %s116
      %p125 = scmp.eq.s32.totalorder %s19, 1
      %p126 = por %p124, %p125
      %p127 = scmp.ne.s32.totalorder %s116, %s117
      %p128 = scmp.eq.s32.totalorder %s19, 0
      %p129 = por %p127, %p128
      %p130 = scmp.ne.s32.totalorder %s116, %s117
      %p131 = scmp.eq.s32.totalorder %s20, 1
      %p132 = por %p130, %p131
      %p134 = scmp.ne.s32.totalorder %s117, %s133
      %p135 = scmp.eq.s32.totalorder %s20, 0
      %p136 = por %p134, %p135
      %p137 = scmp.le.s32.totalorder 1, %s14
      %p138 = scmp.lt.s32.totalorder %s14, 3
      %p139 = pnand %p137, %p138
      %p140 = pneg %p139
      // Predicated region
      $region9: #{grouped_query_attention.1} parent=5 // pred_check
        _
      $region10: #{grouped_query_attention.1} parent=5 // pred_check_branch
        %142 = sbr.rel (%p139) target = $region12
      $region11: #{grouped_query_attention.1} parent=5 // pred_region
        %s143 = ssub.s32 %s14, 1
        // Predicated region
        $region13: #{grouped_query_attention.1} parent=11 // pred_check
          %p144 = pneg %p61
        $region14: #{grouped_query_attention.1} parent=11 // pred_check_branch
          %146 = sbr.rel (%p144) target = $region16
        $region15: #{grouped_query_attention.1} parent=11 // pred_region
          _
        $region16: #{grouped_query_attention.1} parent=11 // pred_fallthru
          _
        // Predicated region
        $region17: #{grouped_query_attention.1} parent=11 // pred_check
          %p147 = pneg %p82
        $region18: #{grouped_query_attention.1} parent=11 // pred_check_branch
          %149 = sbr.rel (%p147) target = $region20
        $region19: #{grouped_query_attention.1} parent=11 // pred_region
          %s151 = ssub.s32 512, 512
          %152 = vsyncadd [#allocation4], %s151
          %s153 = sshll.u32 [#allocation3], 4
          %s154 = int_to_ptr.vmem [resolvable:$true] %s153
          %159 = dma.hbm_to_vmem [thread:$0]  %s2, 512, %s154, [#allocation4], 64, 64, 4
        $region20: #{grouped_query_attention.1} parent=11 // pred_fallthru
          _
        // Predicated region
        $region21: #{grouped_query_attention.1} parent=11 // pred_check
          %p160 = pneg %p103
        $region22: #{grouped_query_attention.1} parent=11 // pred_check_branch
          %162 = sbr.rel (%p160) target = $region24
        $region23: #{grouped_query_attention.1} parent=11 // pred_region
          _
        $region24: #{grouped_query_attention.1} parent=11 // pred_fallthru
          _
      $region12: #{grouped_query_attention.1} parent=5 // pred_fallthru
        _
      %p163 = scmp.lt.s32.totalorder %s14, 2
      // Predicated region
      $region25: #{grouped_query_attention.1} parent=5 // pred_check
        %p164 = pneg %p163
      $region26: #{grouped_query_attention.1} parent=5 // pred_check_branch
        %166 = sbr.rel (%p164) target = $region28
      $region27: #{grouped_query_attention.1} parent=5 // pred_region
        // Predicated region
        $region29: #{grouped_query_attention.1} parent=27 // pred_check
          %p167 = pneg %p34
        $region30: #{grouped_query_attention.1} parent=27 // pred_check_branch
          %169 = sbr.rel (%p167) target = $region32
        $region31: #{grouped_query_attention.1} parent=27 // pred_region
          %p170 = scmp.lt.s32.totalorder %s14, 1
          %s171 = scalar_select %p170, %s14, 1
          %s172 = smul.addr %s171, 4
          %s173 = scalar_lea.vmem %s0, %s172
        $region32: #{grouped_query_attention.1} parent=27 // pred_fallthru
          _
      $region28: #{grouped_query_attention.1} parent=5 // pred_fallthru
        _
      %p174 = scmp.le.s32.totalorder 1, %s14
      %p175 = scmp.lt.s32.totalorder %s14, 3
      %p176 = pnand %p174, %p175
      %p177 = pneg %p176
      // Predicated region
      $region33: #{grouped_query_attention.1} parent=5 // pred_check
        _
      $region34: #{grouped_query_attention.1} parent=5 // pred_check_branch
        %179 = sbr.rel (%p176) target = $region36
      $region35: #{grouped_query_attention.1} parent=5 // pred_region
        %s180 = ssub.s32 %s14, 1
        // Predicated region
        $region37: #{grouped_query_attention.1} parent=35 // pred_check
          %p181 = pneg %p82
        $region38: #{grouped_query_attention.1} parent=35 // pred_check_branch
          %183 = sbr.rel (%p181) target = $region40
        $region39: #{grouped_query_attention.1} parent=35 // pred_region
          %184 = dma.done [#allocation4], 512
        $region40: #{grouped_query_attention.1} parent=35 // pred_fallthru
          _
        %p185 = scmp.lt.s32.totalorder %s19, 1
        %s186 = scalar_select %p185, %s19, 1
        %s187 = smul.addr %s186, 4
        %s188 = scalar_lea.vmem %s0, %s187
        %p189 = pneg %p40
        %p190 = pneg %p37
        %p191 = pneg %p61
        %p192 = pneg %p58
        %p193 = pneg %p82
        %p194 = pneg %p79
        %p195 = pneg %p103
        %p196 = pneg %p100
        %p197 = pneg %p129
        %p198 = pneg %p126
        %s199 = sand.u32 %s116, 1
        %s200 = scalar_lea.sflag [#allocation5], %s199
        %s201 = sand.u32 %s116, 1
        %s202 = smul.addr %s201, 8
        %s203 = scalar_lea.vmem [#allocation6], %s202
        %p204 = scmp.lt.s32.totalorder %s19, 1
        %s205 = scalar_select %p204, %s19, 1
        %s206 = smul.addr %s205, 4
        %s207 = scalar_lea.vmem %s0, %s206
        %v209 = vld [vmem:[%s207] sm:$0xf]
        %v210 = vld [vmem:[%s1] sm:$0xf]
        %v211 = vld [vmem:[%s1 + $0x4] sm:$0xf]
        %v212 = vld [vmem:[%s1 + $0x8] sm:$0xf]
        %v213 = vld [vmem:[%s1 + $0xc] sm:$0xf]
        %v218 = vunpack.c.l.b16 %v210
        %v219 = vunpack.c.l.b16 %v211
        %v220 = vunpack.c.l.b16 %v212
        %v221 = vunpack.c.l.b16 %v213
        %v222 = vpack.c.b16 %v219, %v218
        %v223 = vpack.c.b16 %v221, %v220
        %vm226 = vcmask 261120
        %v228 = vsel %vm226, %v209, 0
        %230 = vmatprep.subr.bf16.mxu0 0
        %231 = vmatpush1.bf16.msra.mxu0 0
        %232 = vmatprep.subr.bf16.mxu0 0
        %233 = vmatpush1.bf16.msra.mxu0 0
        %234 = vmatprep.subr.bf16.mxu0 0
        %235 = vmatpush1.bf16.msra.mxu0 0
        %236 = vmatprep.subr.bf16.mxu0 0
        %237 = vmatpush1.bf16.msra.mxu0 0
        %238 = vmatprep.subr.bf16.mxu0 0
        %239 = vmatpush1.bf16.msra.mxu0 0
        %240 = vmatprep.subr.bf16.mxu0 0
        %241 = vmatpush1.bf16.msra.mxu0 0
        %242 = vmatprep.subr.bf16.mxu0 0
        %243 = vmatpush1.bf16.msra.mxu0 %v223
        %244 = vmatprep.subr.bf16.mxu0 0
        %245 = vmatpush1.bf16.msra.mxu0 %v222
        %246 = vmatprep.subr.bf16.mxu0 0
        %247 = vmatpush2.bf16.msra.mxu0 0
        %248 = vmatprep.subr.bf16.mxu0 0
        %249 = vmatpush2.bf16.msra.mxu0 0
        %250 = vmatprep.subr.bf16.mxu0 0
        %251 = vmatpush2.bf16.msra.mxu0 0
        %252 = vmatprep.subr.bf16.mxu0 0
        %253 = vmatpush2.bf16.msra.mxu0 0
        %254 = vmatprep.subr.bf16.mxu0 0
        %255 = vmatpush2.bf16.msra.mxu0 0
        %256 = vmatprep.subr.bf16.mxu0 0
        %257 = vmatpush2.bf16.msra.mxu0 0
        %258 = vmatprep.subr.bf16.mxu0 0
        %259 = vmatpush2.bf16.msra.mxu0 0
        %260 = vmatprep.subr.bf16.mxu0 0
        %261 = vmatpush2.bf16.msra.mxu0 0
        %262 = vmatprep.mubr.bf16.mxu0 0
        %263 = vmatmul.mubr.bf16.gmra.mxu0 %v228
        %v264 = vpop.f32.mrf.mxu0
        %v265 = vadd.f32 0.0, %v264
        %v266 = vpop.f32.mrf.mxu0
        %v267 = vpop.f32.mrf.mxu0
        %v268 = vpop.f32.mrf.mxu0
        %269 = vdwg.mxu0
        %v270 = vpack.c.bf16 %v265, %v265
        %v271 = vlaneseq
        %v272 = vshrl.u32 %v271, 7
        %v273 = vlaneseq
        %v274 = vand.u32 %v273, 127
        %vm275 = vcmp.ge.s32.totalorder %v272, %v274
        %v276 = vsel %vm275, 0.0, -1e+30
        %278 = vrot.lane.b32.xlu0 %v270, 64
        %v279 = vpop.permute.xlu0 %278
        %vm280 = vcmask 130048
        %v282 = vsel %vm280, %v270, 0
        %v285 = vsel %vm280, %v279, 0
        %287 = vmatprep.subr.bf16.mxu0 0
        %288 = vmatpush1.bf16.xpose.msra.mxu0 0
        %289 = vmatprep.subr.bf16.mxu0 0
        %290 = vmatpush1.bf16.xpose.msra.mxu0 0
        %291 = vmatprep.subr.bf16.mxu0 0
        %292 = vmatpush1.bf16.xpose.msra.mxu0 0
        %293 = vmatprep.subr.bf16.mxu0 0
        %294 = vmatpush1.bf16.xpose.msra.mxu0 0
        %295 = vmatprep.subr.bf16.mxu0 0
        %296 = vmatpush1.bf16.xpose.msra.mxu0 0
        %297 = vmatprep.subr.bf16.mxu0 0
        %298 = vmatpush1.bf16.xpose.msra.mxu0 0
        %299 = vmatprep.subr.bf16.mxu0 0
        %300 = vmatpush1.bf16.xpose.msra.mxu0 0
        %301 = vmatprep.subr.bf16.mxu0 0
        %302 = vmatpush1.bf16.xpose.msra.mxu0 %v285
        %303 = vmatprep.subr.bf16.mxu0 0
        %304 = vmatpush2.bf16.xpose.msra.mxu0 0
        %305 = vmatprep.subr.bf16.mxu0 0
        %306 = vmatpush2.bf16.xpose.msra.mxu0 0
        %307 = vmatprep.subr.bf16.mxu0 0
        %308 = vmatpush2.bf16.xpose.msra.mxu0 0
        %309 = vmatprep.subr.bf16.mxu0 0
        %310 = vmatpush2.bf16.xpose.msra.mxu0 0
        %311 = vmatprep.subr.bf16.mxu0 0
        %312 = vmatpush2.bf16.xpose.msra.mxu0 0
        %313 = vmatprep.subr.bf16.mxu0 0
        %314 = vmatpush2.bf16.xpose.msra.mxu0 0
        %315 = vmatprep.subr.bf16.mxu0 0
        %316 = vmatpush2.bf16.xpose.msra.mxu0 0
        %317 = vmatprep.subr.bf16.mxu0 0
        %318 = vmatpush2.bf16.xpose.msra.mxu0 0
        %319 = vmatprep.mubr.bf16.mxu0 0
        %320 = vmatmul.mubr.bf16.gmra.mxu0 %v282
        %v321 = vpop.f32.mrf.mxu0
        %v322 = vadd.f32 0.0, %v321
        %v323 = vpop.f32.mrf.mxu0
        %v324 = vpop.f32.mrf.mxu0
        %v325 = vpop.f32.mrf.mxu0
        %326 = vdwg.mxu0
        %v327 = vmul.f32 %v322, 0.25
        %v328 = vadd.f32 %v327, %v276
        %vm329 = vcmask 64512
        %v330 = vsel %vm329, %v328, -inf
        %331 = vmax.xlane.f32.xlu0 %v330
        %v332 = vpop.xlane.xlu0 %331
        %v333 = vsub.f32 %v328, %v332
        %v334 = vmul.f32 %v333, 1.442695
        %v335 = vpow.pop %v334
        %v336 = vsel %vm329, %v335, 0.0
        %337 = vadd.xlane.f32.xlu0 %v336
        %v338 = vpop.xlane.xlu0 %337
        %v339 = vrcp.pop %v338
        %v340 = vmul.f32 %v335, %v339
        %v341 = vpack.c.bf16 %v340, %v340
        %342 = vrot.lane.b32.xlu0 %v270, 32
        %v343 = vpop.permute.xlu0 %342
        %v345 = vsel %vm329, %v341, 0
        %vm347 = vcmask 1043456
        %v349 = vsel %vm347, %v343, 0
        %351 = vmatprep.subr.bf16.mxu0 0
        %352 = vmatpush1.bf16.msra.mxu0 0
        %353 = vmatprep.subr.bf16.mxu0 0
        %354 = vmatpush1.bf16.msra.mxu0 0
        %355 = vmatprep.subr.bf16.mxu0 0
        %356 = vmatpush1.bf16.msra.mxu0 0
        %357 = vmatprep.subr.bf16.mxu0 0
        %358 = vmatpush1.bf16.msra.mxu0 0
        %359 = vmatprep.subr.bf16.mxu0 0
        %360 = vmatpush1.bf16.msra.mxu0 0
        %361 = vmatprep.subr.bf16.mxu0 0
        %362 = vmatpush1.bf16.msra.mxu0 0
        %363 = vmatprep.subr.bf16.mxu0 0
        %364 = vmatpush1.bf16.msra.mxu0 0
        %365 = vmatprep.subr.bf16.mxu0 0
        %366 = vmatpush1.bf16.msra.mxu0 %v349
        %367 = vmatprep.subr.bf16.mxu0 0
        %368 = vmatpush2.bf16.msra.mxu0 0
        %369 = vmatprep.subr.bf16.mxu0 0
        %370 = vmatpush2.bf16.msra.mxu0 0
        %371 = vmatprep.subr.bf16.mxu0 0
        %372 = vmatpush2.bf16.msra.mxu0 0
        %373 = vmatprep.subr.bf16.mxu0 0
        %374 = vmatpush2.bf16.msra.mxu0 0
        %375 = vmatprep.subr.bf16.mxu0 0
        %376 = vmatpush2.bf16.msra.mxu0 0
        %377 = vmatprep.subr.bf16.mxu0 0
        %378 = vmatpush2.bf16.msra.mxu0 0
        %379 = vmatprep.subr.bf16.mxu0 0
        %380 = vmatpush2.bf16.msra.mxu0 0
        %381 = vmatprep.subr.bf16.mxu0 0
        %382 = vmatpush2.bf16.msra.mxu0 0
        %383 = vmatprep.mubr.bf16.mxu0 0
        %384 = vmatmul.mubr.bf16.gmra.mxu0 %v345
        %v385 = vpop.f32.mrf.mxu0
        %v386 = vadd.f32 0.0, %v385
        %v387 = vpop.f32.mrf.mxu0
        %v388 = vpop.f32.mrf.mxu0
        %v389 = vpop.f32.mrf.mxu0
        %390 = vdwg.mxu0
        %v391 = vpack.c.bf16 %v386, %v386
        %vm392 = vcmask 125952
        %393 = vst.msk [vmem:[#allocation2] sm:$0xf] %vm392, %v391
        %394 = vrot.lane.b32.xlu0 %v270, 112
        %v395 = vpop.permute.xlu0 %394
        %v397 = vsel %vm280, %v395, 0
        %399 = vmatprep.subr.bf16.mxu0 0
        %400 = vmatpush1.bf16.xpose.msra.mxu0 0
        %401 = vmatprep.subr.bf16.mxu0 0
        %402 = vmatpush1.bf16.xpose.msra.mxu0 0
        %403 = vmatprep.subr.bf16.mxu0 0
        %404 = vmatpush1.bf16.xpose.msra.mxu0 0
        %405 = vmatprep.subr.bf16.mxu0 0
        %406 = vmatpush1.bf16.xpose.msra.mxu0 0
        %407 = vmatprep.subr.bf16.mxu0 0
        %408 = vmatpush1.bf16.xpose.msra.mxu0 0
        %409 = vmatprep.subr.bf16.mxu0 0
        %410 = vmatpush1.bf16.xpose.msra.mxu0 0
        %411 = vmatprep.subr.bf16.mxu0 0
        %412 = vmatpush1.bf16.xpose.msra.mxu0 0
        %413 = vmatprep.subr.bf16.mxu0 0
        %414 = vmatpush1.bf16.xpose.msra.mxu0 %v285
        %415 = vmatprep.subr.bf16.mxu0 0
        %416 = vmatpush2.bf16.xpose.msra.mxu0 0
        %417 = vmatprep.subr.bf16.mxu0 0
        %418 = vmatpush2.bf16.xpose.msra.mxu0 0
        %419 = vmatprep.subr.bf16.mxu0 0
        %420 = vmatpush2.bf16.xpose.msra.mxu0 0
        %421 = vmatprep.subr.bf16.mxu0 0
        %422 = vmatpush2.bf16.xpose.msra.mxu0 0
        %423 = vmatprep.subr.bf16.mxu0 0
        %424 = vmatpush2.bf16.xpose.msra.mxu0 0
        %425 = vmatprep.subr.bf16.mxu0 0
        %426 = vmatpush2.bf16.xpose.msra.mxu0 0
        %427 = vmatprep.subr.bf16.mxu0 0
        %428 = vmatpush2.bf16.xpose.msra.mxu0 0
        %429 = vmatprep.subr.bf16.mxu0 0
        %430 = vmatpush2.bf16.xpose.msra.mxu0 0
        %431 = vmatprep.mubr.bf16.mxu0 0
        %432 = vmatmul.mubr.bf16.gmra.mxu0 %v397
        %v433 = vpop.f32.mrf.mxu0
        %v434 = vadd.f32 0.0, %v433
        %v435 = vpop.f32.mrf.mxu0
        %v436 = vpop.f32.mrf.mxu0
        %v437 = vpop.f32.mrf.mxu0
        %438 = vdwg.mxu0
        %v439 = vmul.f32 %v434, 0.25
        %v440 = vadd.f32 %v439, %v276
        %v441 = vsel %vm329, %v440, -inf
        %442 = vmax.xlane.f32.xlu0 %v441
        %v443 = vpop.xlane.xlu0 %442
        %v444 = vsub.f32 %v440, %v443
        %v445 = vmul.f32 %v444, 1.442695
        %v446 = vpow.pop %v445
        %v447 = vsel %vm329, %v446, 0.0
        %448 = vadd.xlane.f32.xlu0 %v447
        %v449 = vpop.xlane.xlu0 %448
        %v450 = vrcp.pop %v449
        %v451 = vmul.f32 %v446, %v450
        %v452 = vpack.c.bf16 %v451, %v451
        %v454 = vsel %vm329, %v452, 0
        %456 = vmatprep.subr.bf16.mxu0 0
        %457 = vmatpush1.bf16.msra.mxu0 0
        %458 = vmatprep.subr.bf16.mxu0 0
        %459 = vmatpush1.bf16.msra.mxu0 0
        %460 = vmatprep.subr.bf16.mxu0 0
        %461 = vmatpush1.bf16.msra.mxu0 0
        %462 = vmatprep.subr.bf16.mxu0 0
        %463 = vmatpush1.bf16.msra.mxu0 0
        %464 = vmatprep.subr.bf16.mxu0 0
        %465 = vmatpush1.bf16.msra.mxu0 0
        %466 = vmatprep.subr.bf16.mxu0 0
        %467 = vmatpush1.bf16.msra.mxu0 0
        %468 = vmatprep.subr.bf16.mxu0 0
        %469 = vmatpush1.bf16.msra.mxu0 0
        %470 = vmatprep.subr.bf16.mxu0 0
        %471 = vmatpush1.bf16.msra.mxu0 %v349
        %472 = vmatprep.subr.bf16.mxu0 0
        %473 = vmatpush2.bf16.msra.mxu0 0
        %474 = vmatprep.subr.bf16.mxu0 0
        %475 = vmatpush2.bf16.msra.mxu0 0
        %476 = vmatprep.subr.bf16.mxu0 0
        %477 = vmatpush2.bf16.msra.mxu0 0
        %478 = vmatprep.subr.bf16.mxu0 0
        %479 = vmatpush2.bf16.msra.mxu0 0
        %480 = vmatprep.subr.bf16.mxu0 0
        %481 = vmatpush2.bf16.msra.mxu0 0
        %482 = vmatprep.subr.bf16.mxu0 0
        %483 = vmatpush2.bf16.msra.mxu0 0
        %484 = vmatprep.subr.bf16.mxu0 0
        %485 = vmatpush2.bf16.msra.mxu0 0
        %486 = vmatprep.subr.bf16.mxu0 0
        %487 = vmatpush2.bf16.msra.mxu0 0
        %488 = vmatprep.mubr.bf16.mxu0 0
        %489 = vmatmul.mubr.bf16.gmra.mxu0 %v454
        %v490 = vpop.f32.mrf.mxu0
        %v491 = vadd.f32 0.0, %v490
        %v492 = vpop.f32.mrf.mxu0
        %v493 = vpop.f32.mrf.mxu0
        %v494 = vpop.f32.mrf.mxu0
        %495 = vdwg.mxu0
        %v496 = vpack.c.bf16 %v491, %v491
        %v498 = vunpack.c.l.b16 %v496
        %v499 = vpack.c.b16 %v498, %v498
        %500 = vrot.lane.b32.xlu0 %v499, 16
        %v501 = vpop.permute.xlu0 %500
        %vm503 = vcmask 257152
        %504 = vst.msk [vmem:[#allocation2] sm:$0xf] %vm503, %v501
        %505 = vrot.lane.b32.xlu0 %v270, 96
        %v506 = vpop.permute.xlu0 %505
        %507 = vrot.lane.b32.xlu0 %v270, 48
        %v508 = vpop.permute.xlu0 %507
        %v510 = vsel %vm280, %v506, 0
        %v513 = vsel %vm280, %v508, 0
        %515 = vmatprep.subr.bf16.mxu0 0
        %516 = vmatpush1.bf16.xpose.msra.mxu0 0
        %517 = vmatprep.subr.bf16.mxu0 0
        %518 = vmatpush1.bf16.xpose.msra.mxu0 0
        %519 = vmatprep.subr.bf16.mxu0 0
        %520 = vmatpush1.bf16.xpose.msra.mxu0 0
        %521 = vmatprep.subr.bf16.mxu0 0
        %522 = vmatpush1.bf16.xpose.msra.mxu0 0
        %523 = vmatprep.subr.bf16.mxu0 0
        %524 = vmatpush1.bf16.xpose.msra.mxu0 0
        %525 = vmatprep.subr.bf16.mxu0 0
        %526 = vmatpush1.bf16.xpose.msra.mxu0 0
        %527 = vmatprep.subr.bf16.mxu0 0
        %528 = vmatpush1.bf16.xpose.msra.mxu0 0
        %529 = vmatprep.subr.bf16.mxu0 0
        %530 = vmatpush1.bf16.xpose.msra.mxu0 %v513
        %531 = vmatprep.subr.bf16.mxu0 0
        %532 = vmatpush2.bf16.xpose.msra.mxu0 0
        %533 = vmatprep.subr.bf16.mxu0 0
        %534 = vmatpush2.bf16.xpose.msra.mxu0 0
        %535 = vmatprep.subr.bf16.mxu0 0
        %536 = vmatpush2.bf16.xpose.msra.mxu0 0
        %537 = vmatprep.subr.bf16.mxu0 0
        %538 = vmatpush2.bf16.xpose.msra.mxu0 0
        %539 = vmatprep.subr.bf16.mxu0 0
        %540 = vmatpush2.bf16.xpose.msra.mxu0 0
        %541 = vmatprep.subr.bf16.mxu0 0
        %542 = vmatpush2.bf16.xpose.msra.mxu0 0
        %543 = vmatprep.subr.bf16.mxu0 0
        %544 = vmatpush2.bf16.xpose.msra.mxu0 0
        %545 = vmatprep.subr.bf16.mxu0 0
        %546 = vmatpush2.bf16.xpose.msra.mxu0 0
        %547 = vmatprep.mubr.bf16.mxu0 0
        %548 = vmatmul.mubr.bf16.gmra.mxu0 %v510
        %v549 = vpop.f32.mrf.mxu0
        %v550 = vadd.f32 0.0, %v549
        %v551 = vpop.f32.mrf.mxu0
        %v552 = vpop.f32.mrf.mxu0
        %v553 = vpop.f32.mrf.mxu0
        %554 = vdwg.mxu0
        %v555 = vmul.f32 %v550, 0.25
        %v556 = vadd.f32 %v555, %v276
        %v557 = vsel %vm329, %v556, -inf
        %558 = vmax.xlane.f32.xlu0 %v557
        %v559 = vpop.xlane.xlu0 %558
        %v560 = vsub.f32 %v556, %v559
        %v561 = vmul.f32 %v560, 1.442695
        %v562 = vpow.pop %v561
        %v563 = vsel %vm329, %v562, 0.0
        %564 = vadd.xlane.f32.xlu0 %v563
        %v565 = vpop.xlane.xlu0 %564
        %v566 = vrcp.pop %v565
        %v567 = vmul.f32 %v562, %v566
        %v568 = vpack.c.bf16 %v567, %v567
        %569 = vrot.lane.b32.xlu0 %v270, 16
        %v570 = vpop.permute.xlu0 %569
        %v572 = vsel %vm329, %v568, 0
        %v575 = vsel %vm347, %v570, 0
        %577 = vmatprep.subr.bf16.mxu0 0
        %578 = vmatpush1.bf16.msra.mxu0 0
        %579 = vmatprep.subr.bf16.mxu0 0
        %580 = vmatpush1.bf16.msra.mxu0 0
        %581 = vmatprep.subr.bf16.mxu0 0
        %582 = vmatpush1.bf16.msra.mxu0 0
        %583 = vmatprep.subr.bf16.mxu0 0
        %584 = vmatpush1.bf16.msra.mxu0 0
        %585 = vmatprep.subr.bf16.mxu0 0
        %586 = vmatpush1.bf16.msra.mxu0 0
        %587 = vmatprep.subr.bf16.mxu0 0
        %588 = vmatpush1.bf16.msra.mxu0 0
        %589 = vmatprep.subr.bf16.mxu0 0
        %590 = vmatpush1.bf16.msra.mxu0 0
        %591 = vmatprep.subr.bf16.mxu0 0
        %592 = vmatpush1.bf16.msra.mxu0 %v575
        %593 = vmatprep.subr.bf16.mxu0 0
        %594 = vmatpush2.bf16.msra.mxu0 0
        %595 = vmatprep.subr.bf16.mxu0 0
        %596 = vmatpush2.bf16.msra.mxu0 0
        %597 = vmatprep.subr.bf16.mxu0 0
        %598 = vmatpush2.bf16.msra.mxu0 0
        %599 = vmatprep.subr.bf16.mxu0 0
        %600 = vmatpush2.bf16.msra.mxu0 0
        %601 = vmatprep.subr.bf16.mxu0 0
        %602 = vmatpush2.bf16.msra.mxu0 0
        %603 = vmatprep.subr.bf16.mxu0 0
        %604 = vmatpush2.bf16.msra.mxu0 0
        %605 = vmatprep.subr.bf16.mxu0 0
        %606 = vmatpush2.bf16.msra.mxu0 0
        %607 = vmatprep.subr.bf16.mxu0 0
        %608 = vmatpush2.bf16.msra.mxu0 0
        %609 = vmatprep.mubr.bf16.mxu0 0
        %610 = vmatmul.mubr.bf16.gmra.mxu0 %v572
        %v611 = vpop.f32.mrf.mxu0
        %v612 = vadd.f32 0.0, %v611
        %v613 = vpop.f32.mrf.mxu0
        %v614 = vpop.f32.mrf.mxu0
        %v615 = vpop.f32.mrf.mxu0
        %616 = vdwg.mxu0
        %v617 = vpack.c.bf16 %v612, %v612
        %v619 = vunpack.c.l.b16 %v617
        %v620 = vpack.c.b16 %v619, %v619
        %621 = vrot.lane.b32.xlu0 %v620, 32
        %v622 = vpop.permute.xlu0 %621
        %vm624 = vcmask 388352
        %625 = vst.msk [vmem:[#allocation2] sm:$0xf] %vm624, %v622
        %626 = vrot.lane.b32.xlu0 %v270, 80
        %v627 = vpop.permute.xlu0 %626
        %v629 = vsel %vm280, %v627, 0
        %631 = vmatprep.subr.bf16.mxu0 0
        %632 = vmatpush1.bf16.xpose.msra.mxu0 0
        %633 = vmatprep.subr.bf16.mxu0 0
        %634 = vmatpush1.bf16.xpose.msra.mxu0 0
        %635 = vmatprep.subr.bf16.mxu0 0
        %636 = vmatpush1.bf16.xpose.msra.mxu0 0
        %637 = vmatprep.subr.bf16.mxu0 0
        %638 = vmatpush1.bf16.xpose.msra.mxu0 0
        %639 = vmatprep.subr.bf16.mxu0 0
        %640 = vmatpush1.bf16.xpose.msra.mxu0 0
        %641 = vmatprep.subr.bf16.mxu0 0
        %642 = vmatpush1.bf16.xpose.msra.mxu0 0
        %643 = vmatprep.subr.bf16.mxu0 0
        %644 = vmatpush1.bf16.xpose.msra.mxu0 0
        %645 = vmatprep.subr.bf16.mxu0 0
        %646 = vmatpush1.bf16.xpose.msra.mxu0 %v513
        %647 = vmatprep.subr.bf16.mxu0 0
        %648 = vmatpush2.bf16.xpose.msra.mxu0 0
        %649 = vmatprep.subr.bf16.mxu0 0
        %650 = vmatpush2.bf16.xpose.msra.mxu0 0
        %651 = vmatprep.subr.bf16.mxu0 0
        %652 = vmatpush2.bf16.xpose.msra.mxu0 0
        %653 = vmatprep.subr.bf16.mxu0 0
        %654 = vmatpush2.bf16.xpose.msra.mxu0 0
        %655 = vmatprep.subr.bf16.mxu0 0
        %656 = vmatpush2.bf16.xpose.msra.mxu0 0
        %657 = vmatprep.subr.bf16.mxu0 0
        %658 = vmatpush2.bf16.xpose.msra.mxu0 0
        %659 = vmatprep.subr.bf16.mxu0 0
        %660 = vmatpush2.bf16.xpose.msra.mxu0 0
        %661 = vmatprep.subr.bf16.mxu0 0
        %662 = vmatpush2.bf16.xpose.msra.mxu0 0
        %663 = vmatprep.mubr.bf16.mxu0 0
        %664 = vmatmul.mubr.bf16.gmra.mxu0 %v629
        %v665 = vpop.f32.mrf.mxu0
        %v666 = vadd.f32 0.0, %v665
        %v667 = vpop.f32.mrf.mxu0
        %v668 = vpop.f32.mrf.mxu0
        %v669 = vpop.f32.mrf.mxu0
        %670 = vdwg.mxu0
        %v671 = vmul.f32 %v666, 0.25
        %v672 = vadd.f32 %v671, %v276
        %v673 = vsel %vm329, %v672, -inf
        %674 = vmax.xlane.f32.xlu0 %v673
        %v675 = vpop.xlane.xlu0 %674
        %v676 = vsub.f32 %v672, %v675
        %v677 = vmul.f32 %v676, 1.442695
        %v678 = vpow.pop %v677
        %v679 = vsel %vm329, %v678, 0.0
        %680 = vadd.xlane.f32.xlu0 %v679
        %v681 = vpop.xlane.xlu0 %680
        %v682 = vrcp.pop %v681
        %v683 = vmul.f32 %v678, %v682
        %v684 = vpack.c.bf16 %v683, %v683
        %v686 = vsel %vm329, %v684, 0
        %688 = vmatprep.subr.bf16.mxu0 0
        %689 = vmatpush1.bf16.msra.mxu0 0
        %690 = vmatprep.subr.bf16.mxu0 0
        %691 = vmatpush1.bf16.msra.mxu0 0
        %692 = vmatprep.subr.bf16.mxu0 0
        %693 = vmatpush1.bf16.msra.mxu0 0
        %694 = vmatprep.subr.bf16.mxu0 0
        %695 = vmatpush1.bf16.msra.mxu0 0
        %696 = vmatprep.subr.bf16.mxu0 0
        %697 = vmatpush1.bf16.msra.mxu0 0
        %698 = vmatprep.subr.bf16.mxu0 0
        %699 = vmatpush1.bf16.msra.mxu0 0
        %700 = vmatprep.subr.bf16.mxu0 0
        %701 = vmatpush1.bf16.msra.mxu0 0
        %702 = vmatprep.subr.bf16.mxu0 0
        %703 = vmatpush1.bf16.msra.mxu0 %v575
        %704 = vmatprep.subr.bf16.mxu0 0
        %705 = vmatpush2.bf16.msra.mxu0 0
        %706 = vmatprep.subr.bf16.mxu0 0
        %707 = vmatpush2.bf16.msra.mxu0 0
        %708 = vmatprep.subr.bf16.mxu0 0
        %709 = vmatpush2.bf16.msra.mxu0 0
        %710 = vmatprep.subr.bf16.mxu0 0
        %711 = vmatpush2.bf16.msra.mxu0 0
        %712 = vmatprep.subr.bf16.mxu0 0
        %713 = vmatpush2.bf16.msra.mxu0 0
        %714 = vmatprep.subr.bf16.mxu0 0
        %715 = vmatpush2.bf16.msra.mxu0 0
        %716 = vmatprep.subr.bf16.mxu0 0
        %717 = vmatpush2.bf16.msra.mxu0 0
        %718 = vmatprep.subr.bf16.mxu0 0
        %719 = vmatpush2.bf16.msra.mxu0 0
        %720 = vmatprep.mubr.bf16.mxu0 0
        %721 = vmatmul.mubr.bf16.gmra.mxu0 %v686
        %v722 = vpop.f32.mrf.mxu0
        %v723 = vadd.f32 0.0, %v722
        %v724 = vpop.f32.mrf.mxu0
        %v725 = vpop.f32.mrf.mxu0
        %v726 = vpop.f32.mrf.mxu0
        %727 = vdwg.mxu0
        %v728 = vpack.c.bf16 %v723, %v723
        %v730 = vunpack.c.l.b16 %v728
        %v731 = vpack.c.b16 %v730, %v730
        %732 = vrot.lane.b32.xlu0 %v731, 48
        %v733 = vpop.permute.xlu0 %732
        %vm735 = vcmask 519552
        %736 = vst.msk [vmem:[#allocation2] sm:$0xf] %vm735, %v733
        %v737 = vld [vmem:[#allocation2] sm:$0xf]
        %v738 = vld [vmem:[#allocation3] sm:$0xf]
        %v739 = vld [vmem:[#allocation3 + $0x4] sm:$0xf]
        %v740 = vld [vmem:[#allocation3 + $0x8] sm:$0xf]
        %v741 = vld [vmem:[#allocation3 + $0xc] sm:$0xf]
        %v742 = vld [vmem:[#allocation3 + $0x10] sm:$0xf]
        %v743 = vld [vmem:[#allocation3 + $0x14] sm:$0xf]
        %v744 = vld [vmem:[#allocation3 + $0x18] sm:$0xf]
        %v745 = vld [vmem:[#allocation3 + $0x1c] sm:$0xf]
        %v746 = vld [vmem:[%s3] sm:$0x1]
        %v748 = vlaneseq
        %v749 = vshrl.u32 %v748, 7
        %v750 = vsub.s32 0, %v749
        %v751 = vrot.slane %v746, %v750
        %v761 = vunpack.c.l.b16 %v738
        %v762 = vunpack.c.l.b16 %v739
        %v763 = vunpack.c.l.b16 %v740
        %v764 = vunpack.c.l.b16 %v741
        %v765 = vunpack.c.l.b16 %v742
        %v766 = vunpack.c.l.b16 %v743
        %v767 = vunpack.c.l.b16 %v744
        %v768 = vunpack.c.l.b16 %v745
        %v769 = vpack.c.b16 %v762, %v761
        %v770 = vpack.c.b16 %v764, %v763
        %v771 = vpack.c.b16 %v766, %v765
        %v772 = vpack.c.b16 %v768, %v767
        %vm777 = vcmask 523264
        %v779 = vsel %vm777, %v737, 0
        %781 = vmatprep.subr.bf16.mxu0 0
        %782 = vmatpush1.bf16.msra.mxu0 0
        %783 = vmatprep.subr.bf16.mxu0 0
        %784 = vmatpush1.bf16.msra.mxu0 0
        %785 = vmatprep.subr.bf16.mxu0 0
        %786 = vmatpush1.bf16.msra.mxu0 0
        %787 = vmatprep.subr.bf16.mxu0 0
        %788 = vmatpush1.bf16.msra.mxu0 0
        %789 = vmatprep.subr.bf16.mxu0 0
        %790 = vmatpush1.bf16.msra.mxu0 %v772
        %791 = vmatprep.subr.bf16.mxu0 0
        %792 = vmatpush1.bf16.msra.mxu0 %v771
        %793 = vmatprep.subr.bf16.mxu0 0
        %794 = vmatpush1.bf16.msra.mxu0 %v770
        %795 = vmatprep.subr.bf16.mxu0 0
        %796 = vmatpush1.bf16.msra.mxu0 %v769
        %797 = vmatprep.subr.bf16.mxu0 0
        %798 = vmatpush2.bf16.msra.mxu0 0
        %799 = vmatprep.subr.bf16.mxu0 0
        %800 = vmatpush2.bf16.msra.mxu0 0
        %801 = vmatprep.subr.bf16.mxu0 0
        %802 = vmatpush2.bf16.msra.mxu0 0
        %803 = vmatprep.subr.bf16.mxu0 0
        %804 = vmatpush2.bf16.msra.mxu0 0
        %805 = vmatprep.subr.bf16.mxu0 0
        %806 = vmatpush2.bf16.msra.mxu0 0
        %807 = vmatprep.subr.bf16.mxu0 0
        %808 = vmatpush2.bf16.msra.mxu0 0
        %809 = vmatprep.subr.bf16.mxu0 0
        %810 = vmatpush2.bf16.msra.mxu0 0
        %811 = vmatprep.subr.bf16.mxu0 0
        %812 = vmatpush2.bf16.msra.mxu0 0
        %813 = vmatprep.mubr.bf16.mxu0 0
        %814 = vmatmul.mubr.bf16.gmra.mxu0 %v779
        %v815 = vpop.f32.mrf.mxu0
        %v816 = vadd.f32 %v751, %v815
        %v817 = vpop.f32.mrf.mxu0
        %v818 = vpop.f32.mrf.mxu0
        %v819 = vpop.f32.mrf.mxu0
        %820 = vdwg.mxu0
        %821 = vst [vmem:[%s203] sm:$0xff] %v816
        %s822 = sand.u32 %s116, 1
        %s823 = scalar_lea.sflag [#allocation5], %s822
        %s824 = sand.u32 %s116, 1
        %s825 = smul.addr %s824, 8
        %s826 = scalar_lea.vmem [#allocation6], %s825
        // Predicated region
        $region41: #{grouped_query_attention.1} parent=35 // pred_check
          %p827 = pneg %p126
        $region42: #{grouped_query_attention.1} parent=35 // pred_check_branch
          %829 = sbr.rel (%p827) target = $region44
        $region43: #{grouped_query_attention.1} parent=35 // pred_region
          %s831 = ssub.s32 128, 128
          %832 = vsyncadd %s823, %s831
          %s833 = smul.addr %s19, 128
          %s834 = scalar_lea.hbm %s4, %s833
          %s836 = sshll.u32 %s826, 4
          %s837 = int_to_ptr.vmem [resolvable:$true] %s836
          %839 = dma.vmem_to_hbm [thread:$0]  %s837, 128, %s834, %s823
        $region44: #{grouped_query_attention.1} parent=35 // pred_fallthru
          _
      $region36: #{grouped_query_attention.1} parent=5 // pred_fallthru
        _
      %p840 = scmp.le.s32.totalorder 2, %s14
      // Predicated region
      $region45: #{grouped_query_attention.1} parent=5 // pred_check
        %p841 = pneg %p840
      $region46: #{grouped_query_attention.1} parent=5 // pred_check_branch
        %843 = sbr.rel (%p841) target = $region48
      $region47: #{grouped_query_attention.1} parent=5 // pred_region
        %s844 = ssub.s32 %s14, 2
        // Predicated region
        $region49: #{grouped_query_attention.1} parent=47 // pred_check
          %p845 = pneg %p132
        $region50: #{grouped_query_attention.1} parent=47 // pred_check_branch
          %847 = sbr.rel (%p845) target = $region52
        $region51: #{grouped_query_attention.1} parent=47 // pred_region
          %s848 = sand.u32 %s117, 1
          %s849 = scalar_lea.sflag [#allocation5], %s848
          %s850 = sand.u32 %s117, 1
          %s851 = smul.addr %s850, 8
          %s852 = scalar_lea.vmem [#allocation6], %s851
          %853 = dma.done %s849, 128
        $region52: #{grouped_query_attention.1} parent=47 // pred_fallthru
          _
      $region48: #{grouped_query_attention.1} parent=5 // pred_fallthru
        _
    $region6: #{grouped_query_attention.1} parent=1 // loop_footer
      %s18 = sadd.s32 1, %s14
    $region7: #{grouped_query_attention.1} parent=1 // loop_footer_branch
      %13 = sbr.rel target = $region3
    $region8: #{grouped_query_attention.1} parent=1 // loop_exit
      _
    %854 = vsyncpa [#allocation4], 1
    %s855 = scalar_lea.sflag [#allocation4], 1
    %856 = vsyncpa %s855, 1
    %857 = vsyncpa [#allocation5], 1
    %s858 = scalar_lea.sflag [#allocation5], 1
    %859 = vsyncpa %s858, 1

</llo_original>
